<compile_context>
chip_gen: v5e
topology: v5e:2x2
jax: 0.10.0
libtpu: 0.0.40
codegen_flags: <defaults>
</compile_context>

<pallas_src>
import jax
import jax.numpy as jnp
from jax.experimental import pallas as pl
from jax.experimental.pallas import tpu as pltpu


def _linear_kernel(x_ref, w_ref, b_ref, y_ref):
    # x_ref: (tb, F)   w_ref: (1, F)   b_ref: (1, 1)   y_ref: (tb, 1)
    x = x_ref[...]
    w = w_ref[...]                                  # (1, F) broadcasts over rows
    # Row-wise dot product: lane-wise multiply (VPU) + one cross-lane reduce
    # (XLU) per tile, then the bias add. All comfortably hidden under the DMA.
    y = jnp.sum(x * w, axis=1, keepdims=True) + b_ref[...]
    y_ref[...] = y.astype(y_ref.dtype)


def linear_pallas(x, weight, bias, *, block_rows=512):
    """PyTorch nn.Linear(n_feature, 1) forward: y = x @ weight.T + bias.

    x: (B, F); weight: (1, F); bias: (1,).  Returns y: (B, 1).
    """
    B, F = x.shape
    out_dtype = x.dtype

    # Row tile: multiple of 8 (sublane granularity), capped near the batch size.
    tb = min(block_rows, ((B + 7) // 8) * 8)
    tb = max(8, (tb // 8) * 8)
    B_pad = pl.cdiv(B, tb) * tb
    if B_pad != B:
        # Padded rows produce junk rows that are sliced off below; the reduction
        # is per-row so they cannot contaminate real outputs.
        x = jnp.pad(x, ((0, B_pad - B), (0, 0)))

    w_2d = weight.reshape(1, F).astype(out_dtype)
    b_2d = bias.reshape(1, 1).astype(out_dtype)

    grid = (B_pad // tb,)
    y_pad = pl.pallas_call(
        _linear_kernel,
        out_shape=jax.ShapeDtypeStruct((B_pad, 1), out_dtype),
        grid=grid,
        in_specs=[
            pl.BlockSpec((tb, F), lambda i: (i, 0)),   # streamed row tiles of x
            pl.BlockSpec((1, F), lambda i: (0, 0)),    # weight, VMEM-resident
            pl.BlockSpec((1, 1), lambda i: (0, 0)),    # bias, VMEM-resident
        ],
        out_specs=pl.BlockSpec((tb, 1), lambda i: (i, 0)),
        compiler_params=pltpu.CompilerParams(
            dimension_semantics=("parallel",),         # shard row tiles across TCs (v7x)
            vmem_limit_bytes=32 * 1024 * 1024,         # safe on v5e/v6e/v7x
        ),
    )(x, w_2d, b_2d)

    return y_pad[:B]


def linear_ref(x, weight, bias):
    return x @ weight.T + bias


if __name__ == "__main__":
    # Small shapes consistent with LinearNet(n_feature=32): x is (batch, n_feature).
    B, F = 2, 32
    key = jax.random.PRNGKey(0)
    kx, kw, kb = jax.random.split(key, 3)

    x = jax.random.normal(kx, (B, F), dtype=jnp.float32)

    # Parameter init matching nn.Linear's default (uniform in +/- 1/sqrt(fan_in)).
    bound = 1.0 / (F ** 0.5)
    weight = jax.random.uniform(kw, (1, F), minval=-bound, maxval=bound,
                                dtype=jnp.float32)
    bias = jax.random.uniform(kb, (1,), minval=-bound, maxval=bound,
                              dtype=jnp.float32)

    y = linear_pallas(x, weight, bias)
    jax.block_until_ready(y)

    y_ref = linear_ref(x, weight, bias)
    assert y.shape == (B, 1)
    assert jnp.allclose(y, y_ref, atol=1e-5, rtol=1e-5)

    print("KERNEL_OK")
</pallas_src>

<mosaic_0001>
module attributes {stable_mosaic.version = 11 : i64} {
  func.func @_linear_kernel(%arg0: i32, %arg1: memref<8x32xf32, #tpu.memory_space<vmem>>, %arg2: memref<1x32xf32, #tpu.memory_space<vmem>>, %arg3: memref<1x1xf32, #tpu.memory_space<vmem>>, %arg4: memref<8x1xf32, #tpu.memory_space<vmem>>) attributes {dimension_semantics = [#tpu.dimension_semantics<parallel>], iteration_bounds = array<i64: 1>, scalar_prefetch = 0 : i64, scratch_operands = 0 : i64, tpu.core_type = #tpu.core_type<tc>, window_params = [{transform_indices = @transform_0, window_bounds = array<i64: 8, 32>}, {pipeline_mode = #tpu.pipeline_mode<synchronous>, transform_indices = @transform_1, window_bounds = array<i64: 1, 32>}, {pipeline_mode = #tpu.pipeline_mode<synchronous>, transform_indices = @transform_2, window_bounds = array<i64: 1, 1>}, {transform_indices = @transform_3, window_bounds = array<i64: 8, 1>}]} {
    %c0 = arith.constant 0 : index
    %c0_0 = arith.constant 0 : index
    %0 = vector.load %arg1[%c0, %c0_0] : memref<8x32xf32, #tpu.memory_space<vmem>>, vector<8x32xf32>
    %c0_1 = arith.constant 0 : index
    %c0_2 = arith.constant 0 : index
    %1 = vector.load %arg2[%c0_1, %c0_2] : memref<1x32xf32, #tpu.memory_space<vmem>>, vector<1x32xf32>
    %2 = vector.broadcast %1 : vector<1x32xf32> to vector<8x32xf32>
    %3 = arith.mulf %0, %2 : vector<8x32xf32>
    %cst = arith.constant dense<0.000000e+00> : vector<8xf32>
    %4 = vector.multi_reduction <add>, %3, %cst [1] : vector<8x32xf32> to vector<8xf32>
    %5 = vector.shape_cast %4 : vector<8xf32> to vector<8x1xf32>
    %c0_3 = arith.constant 0 : index
    %c0_4 = arith.constant 0 : index
    %6 = vector.load %arg3[%c0_3, %c0_4] : memref<1x1xf32, #tpu.memory_space<vmem>>, vector<1x1xf32>
    %7 = vector.broadcast %6 : vector<1x1xf32> to vector<8x1xf32>
    %8 = arith.addf %5, %7 : vector<8x1xf32>
    %c0_5 = arith.constant 0 : index
    %c0_6 = arith.constant 0 : index
    %9 = vector.load %arg4[%c0_5, %c0_6] : memref<8x1xf32, #tpu.memory_space<vmem>>, vector<8x1xf32>
    tpu.vector_store %arg4[%c0_5, %c0_6], %8 {strides = array<i32>} : memref<8x1xf32, #tpu.memory_space<vmem>>, vector<8x1xf32>,
    return
  }
  func.func @transform_0(%arg0: i32) -> (i32, i32) {
    %c0_i32 = arith.constant 0 : i32
    %c0_i32_0 = arith.constant 0 : i32
    return %arg0, %c0_i32 : i32, i32
  }
  func.func @transform_1(%arg0: i32) -> (i32, i32) {
    %c0_i32 = arith.constant 0 : i32
    %c0_i32_0 = arith.constant 0 : i32
    %c0_i32_1 = arith.constant 0 : i32
    return %c0_i32, %c0_i32_0 : i32, i32
  }
  func.func @transform_2(%arg0: i32) -> (i32, i32) {
    %c0_i32 = arith.constant 0 : i32
    %c0_i32_0 = arith.constant 0 : i32
    %c0_i32_1 = arith.constant 0 : i32
    return %c0_i32, %c0_i32_0 : i32, i32
  }
  func.func @transform_3(%arg0: i32) -> (i32, i32) {
    %c0_i32 = arith.constant 0 : i32
    %c0_i32_0 = arith.constant 0 : i32
    return %arg0, %c0_i32 : i32, i32
  }
}

</mosaic_0001>

<llo_original>
// kernel: tpu_custom_call.1
$region0: #{tpu_custom_call.1}
  #allocation0 [shape = 'u32[]', space=smem, size = 0x4, offset = 0x4, fixed_abs, tag = 'smem constant byte address 0x4 - core index']
  #allocation1 [shape = 'u32[72,128]{1,0:T(1,128)}', space=vmem, size = 0x9000, scoped, tag = 'internal scratch']
  #allocation2 [shape = 'f32[1,1]{1,0:T(1,128)S(1)}', space=vmem, size = 0x200, scoped, tag = 'scoped memory for tpu_custom_call.1']
  %s0 = inlined_call_operand.hbm [shape: f32[8,32], index: 0, kind: input, shape index: {}]
  %s1 = inlined_call_operand.vmem [shape: f32[1,32], index: 1, kind: input, shape index: {}]
  %s2 = inlined_call_operand.<no memory space> [shape: f32[1,1], index: 2, kind: input, shape index: {}]
  %s3 = inlined_call_operand.vmem [shape: f32[8,1], index: 3, kind: output, shape index: {}]
  %s4 = sld [smem:[#allocation0]]
  $region26: #{tpu_custom_call.1} parent=0
    _
  %s6 = ssub.s32 1, %s4
  %s7 = scalar_select 0, %s6, %s4
  %v8 = vstv %s2
  %9 = vst [vmem:[#allocation2] sm:$0x1] %v8
  $region1: #{tpu_custom_call.1} parent=0
    #allocation3 [shape = 'u8[4096]{0}', space=vmem, size = 0x1000, scoped, tag = 'input window, operand 0, single buffered']
    #allocation4 [shape = 's32[1]{0}', space=sflag, size = 0x4, scoped, tag = 'scoped memory for tpu_custom_call.1']
    %10 = vsyncpa [#allocation4], 0
    // Predicated region
    $region2: #{tpu_custom_call.1} parent=1 // pred_check
      _
    $region3: #{tpu_custom_call.1} parent=1 // pred_check_branch
      %12 = sbr.rel (0) target = $region5
    $region4: #{tpu_custom_call.1} parent=1 // pred_region
      %14 = vsyncadd [#allocation4], 0
      %s16 = sshll.u32 %s0, 4
      %s17 = int_to_ptr.hbm [resolvable:$true] %s16
      %s18 = sshll.u32 [#allocation3], 4
      %s19 = int_to_ptr.vmem [resolvable:$true] %s18
      %21 = dma.hbm_to_vmem [thread:$0]  %s17, 128, %s19, [#allocation4]
    $region5: #{tpu_custom_call.1} parent=1 // pred_fallthru
      _
    // Predicated region
    $region6: #{tpu_custom_call.1} parent=1 // pred_check
      _
    $region7: #{tpu_custom_call.1} parent=1 // pred_check_branch
      %23 = sbr.rel (0) target = $region9
    $region8: #{tpu_custom_call.1} parent=1 // pred_region
      _
    $region9: #{tpu_custom_call.1} parent=1 // pred_fallthru
      _
    // Predicated region
    $region10: #{tpu_custom_call.1} parent=1 // pred_check
      _
    $region11: #{tpu_custom_call.1} parent=1 // pred_check_branch
      %25 = sbr.rel (0) target = $region13
    $region12: #{tpu_custom_call.1} parent=1 // pred_region
      _
    $region13: #{tpu_custom_call.1} parent=1 // pred_fallthru
      _
    // Predicated region
    $region14: #{tpu_custom_call.1} parent=1 // pred_check
      _
    $region15: #{tpu_custom_call.1} parent=1 // pred_check_branch
      %27 = sbr.rel (0) target = $region17
    $region16: #{tpu_custom_call.1} parent=1 // pred_region
      %29 = dma.done [#allocation4], 128
    $region17: #{tpu_custom_call.1} parent=1 // pred_fallthru
      _
    %v30 = vld [vmem:[#allocation3] sm:$0xff]
    %v31 = vld [vmem:[%s1] sm:$0x1]
    %v33 = vperm.slane %v31, 0
    %v35 = vmul.f32 %v30, %v33
    %vm36 = vcmask 261120
    %v37 = vsel %vm36, %v35, 0.0
    %38 = vadd.xlane.f32.xlu0 %v37
    %v39 = vpop.xlane.xlu0 %38
    %v40 = vld [vmem:[#allocation2] sm:$0x1]
    %v42 = vperm.slane %v40, 0
    %v44 = vadd.f32 %v39, %v42
    %vm45 = vcmask 7168
    %46 = vst.msk [vmem:[%s3] sm:$0xff] %vm45, %v44
    // Predicated region
    $region18: #{tpu_custom_call.1} parent=1 // pred_check
      _
    $region19: #{tpu_custom_call.1} parent=1 // pred_check_branch
      %48 = sbr.rel (0) target = $region21
    $region20: #{tpu_custom_call.1} parent=1 // pred_region
      _
    $region21: #{tpu_custom_call.1} parent=1 // pred_fallthru
      _
    // Predicated region
    $region22: #{tpu_custom_call.1} parent=1 // pred_check
      _
    $region23: #{tpu_custom_call.1} parent=1 // pred_check_branch
      %50 = sbr.rel (0) target = $region25
    $region24: #{tpu_custom_call.1} parent=1 // pred_region
      _
    $region25: #{tpu_custom_call.1} parent=1 // pred_fallthru
      _
    %51 = vsyncpa [#allocation4], 1

</llo_original>
